<compile_context>
chip_gen: v7x
topology: tpu7x:2x2x1
jax: 0.10.0
libtpu: 0.0.40
codegen_flags: <defaults>
</compile_context>

<pallas_src>
import jax
import jax.numpy as jnp
from jax.experimental import pallas as pl
from jax.experimental.pallas import tpu as pltpu


# ----------------------------------------------------------------------------
# Production path: contiguous flatten is a free metadata view — no kernel.
# ----------------------------------------------------------------------------
def flatten_layer(x):
    """FlattenLayer.forward — a contiguous flatten is a 0-byte metadata view."""
    return x.reshape(x.shape[0], -1)


# ----------------------------------------------------------------------------
# Optional explicit Pallas copy kernel (lane-dense 2D tiles).
# ----------------------------------------------------------------------------
def _flatten_copy_kernel(x_ref, o_ref):
    o_ref[...] = x_ref[...]


def _sublane_tile(itemsize):
    # Sub-32-bit dtypes pack along sublanes: f32 -> 8, bf16 -> 16, int8/fp8 -> 32.
    return 8 * max(1, 4 // max(1, itemsize))


def _round_up(x, m):
    return ((x + m - 1) // m) * m


def _round_down_min(x, m):
    return max(m, (x // m) * m)


def _vmem_budget():
    """(max_block_bytes, vmem_limit_bytes) keyed on the chip's physical VMEM."""
    block, limit = 4 * 1024 * 1024, 32 * 1024 * 1024  # v7x-safe default (64 MiB VMEM)
    try:
        cap = pltpu.get_tpu_info().vmem_capacity_bytes
        if cap >= 128 * 1024 * 1024:                   # v5e / v6e
            block, limit = 8 * 1024 * 1024, 64 * 1024 * 1024
    except Exception:
        pass
    return block, limit


def _choose_block(n, d, itemsize, max_block_bytes):
    sub = _sublane_tile(itemsize)
    lane = 128
    n_pad = _round_up(n, sub)
    d_pad = _round_up(d, lane)
    # Lane tile first (lane-dense output is the biggest single lever): aim for
    # td = D whenever a (sub, D) block fits the per-block budget.
    lane_cap = _round_down_min(max_block_bytes // (sub * itemsize), lane)
    td = min(d_pad, lane_cap)
    # Then fill the remaining budget along sublanes.
    sub_cap = _round_down_min(max_block_bytes // (td * itemsize), sub)
    tm = min(n_pad, sub_cap)
    # Prefer >= 2 grid steps so both v7x TensorCores get work (harmless on 1 TC).
    if pl.cdiv(n, tm) * pl.cdiv(d, td) == 1:
        if n_pad > sub:
            tm = max(sub, _round_up(pl.cdiv(n_pad, 2), sub))
        elif d_pad > lane:
            td = max(lane, _round_up(pl.cdiv(d_pad, 2), lane))
    return tm, td


def flatten_layer_pallas(x):
    """FlattenLayer.forward as an explicit Pallas copy kernel (fusion stub)."""
    n = x.shape[0]
    d = 1
    for s in x.shape[1:]:
        d *= s
    x2d = x.reshape(n, d)                       # metadata-only view
    itemsize = jnp.dtype(x.dtype).itemsize
    max_block_bytes, vmem_limit = _vmem_budget()
    tm, td = _choose_block(n, d, itemsize, max_block_bytes)
    grid = (pl.cdiv(n, tm), pl.cdiv(d, td))

    return pl.pallas_call(
        _flatten_copy_kernel,
        out_shape=jax.ShapeDtypeStruct((n, d), x.dtype),
        grid_spec=pltpu.PrefetchScalarGridSpec(
            num_scalar_prefetch=0,
            grid=grid,
            in_specs=[pl.BlockSpec((tm, td), lambda i, j: (i, j))],
            out_specs=pl.BlockSpec((tm, td), lambda i, j: (i, j)),
        ),
        compiler_params=pltpu.CompilerParams(
            dimension_semantics=("parallel", "parallel"),
            vmem_limit_bytes=vmem_limit,
        ),
        cost_estimate=pl.CostEstimate(
            flops=0, transcendentals=0, bytes_accessed=2 * n * d * itemsize),
    )(x2d)


# ----------------------------------------------------------------------------
# Fusion of the flatten into a consumer matmul (the TODO from the review):
# y = flatten(x) @ w, with the flatten expressed purely as the LHS view/indexing
# of the matmul kernel — the flattened (N, D) tensor is never materialized.
# ----------------------------------------------------------------------------
def _fused_flatten_linear_kernel(x_ref, w_ref, o_ref, acc_ref):
    @pl.when(pl.program_id(0) == 0)
    def _init():
        acc_ref[...] = jnp.zeros_like(acc_ref)

    acc_ref[...] += jnp.dot(x_ref[...], w_ref[...],
                            preferred_element_type=jnp.float32)

    @pl.when(pl.program_id(0) == pl.num_programs(0) - 1)
    def _done():
        o_ref[...] = acc_ref[...].astype(o_ref.dtype)


def fused_flatten_linear(x, w, *, tk=512):
    """Flatten fused into the consumer matmul's LHS (no standalone copy kernel)."""
    n = x.shape[0]
    d = 1
    for s in x.shape[1:]:
        d *= s
    x2d = x.reshape(n, d)                       # free view — this IS the fused flatten
    f_out = w.shape[1]
    if d % tk != 0:
        tk = d                                  # small/unaligned K: single K step
    grid_k = d // tk

    return pl.pallas_call(
        _fused_flatten_linear_kernel,
        out_shape=jax.ShapeDtypeStruct((n, f_out), x.dtype),
        grid_spec=pltpu.PrefetchScalarGridSpec(
            num_scalar_prefetch=0,
            grid=(grid_k,),
            in_specs=[
                pl.BlockSpec((n, tk), lambda k: (0, k)),
                pl.BlockSpec((tk, f_out), lambda k: (k, 0)),
            ],
            out_specs=pl.BlockSpec((n, f_out), lambda k: (0, 0)),
            scratch_shapes=[pltpu.VMEM((n, f_out), jnp.float32)],
        ),
        compiler_params=pltpu.CompilerParams(
            dimension_semantics=("arbitrary",),
        ),
    )(x2d, w)


if __name__ == "__main__":
    key = jax.random.PRNGKey(0)
    kx, kw = jax.random.split(key)
    # Small NCHW input consistent with a conv-style feature map: (2, 4, 16, 16).
    x = jax.random.normal(kx, (2, 4, 16, 16), dtype=jnp.float32)
    n, d = x.shape[0], 4 * 16 * 16

    # Reference: mirrors torch x.view(x.shape[0], -1).
    y_ref = x.reshape(n, -1)

    # 1) Production path: kernel-free flatten.
    y_view = jax.block_until_ready(flatten_layer(x))
    assert y_view.shape == (n, d) and y_view.dtype == x.dtype
    assert jnp.array_equal(y_view, y_ref)

    # 2) Optional explicit Pallas copy kernel.
    y_kernel = jax.block_until_ready(flatten_layer_pallas(x))
    assert y_kernel.shape == (n, d) and y_kernel.dtype == x.dtype
    assert jnp.array_equal(y_kernel, y_ref)

    # 3) Fusion demo: flatten absorbed into the consumer matmul's LHS.
    #    (bf16 inputs, f32 accumulation — standard MXU path on all chips.)
    w = jax.random.normal(kw, (d, 32), dtype=jnp.float32)
    xb, wb = x.astype(jnp.bfloat16), w.astype(jnp.bfloat16)
    y_fused = jax.block_until_ready(fused_flatten_linear(xb, wb))
    y_fused_ref = jnp.dot(xb.reshape(n, -1), wb,
                          preferred_element_type=jnp.float32).astype(jnp.bfloat16)
    assert y_fused.shape == (n, 32)
    assert jnp.allclose(y_fused.astype(jnp.float32),
                        y_fused_ref.astype(jnp.float32),
                        rtol=2e-2, atol=1e-2)

    print("KERNEL_OK")
</pallas_src>

<mosaic_0001>
module attributes {stable_mosaic.version = 11 : i64} {
  func.func @_flatten_copy_kernel(%arg0: i32, %arg1: i32, %arg2: memref<8x512xf32, #tpu.memory_space<vmem>>, %arg3: memref<8x512xf32, #tpu.memory_space<vmem>>) attributes {dimension_semantics = [#tpu.dimension_semantics<parallel>, #tpu.dimension_semantics<parallel>], iteration_bounds = array<i64: 1, 2>, scalar_prefetch = 0 : i64, scratch_operands = 0 : i64, tpu.core_type = #tpu.core_type<tc>, window_params = [{transform_indices = @transform_0, window_bounds = array<i64: 8, 512>}, {transform_indices = @transform_1, window_bounds = array<i64: 8, 512>}]} {
    %c0 = arith.constant 0 : index
    %c0_0 = arith.constant 0 : index
    %0 = vector.load %arg2[%c0, %c0_0] : memref<8x512xf32, #tpu.memory_space<vmem>>, vector<8x512xf32>
    %c0_1 = arith.constant 0 : index
    %c0_2 = arith.constant 0 : index
    %1 = vector.load %arg3[%c0_1, %c0_2] : memref<8x512xf32, #tpu.memory_space<vmem>>, vector<8x512xf32>
    tpu.vector_store %arg3[%c0_1, %c0_2], %0 {strides = array<i32>} : memref<8x512xf32, #tpu.memory_space<vmem>>, vector<8x512xf32>,
    return
  }
  func.func @transform_0(%arg0: i32, %arg1: i32) -> (i32, i32) {
    %c0_i32 = arith.constant 0 : i32
    return %arg0, %arg1 : i32, i32
  }
  func.func @transform_1(%arg0: i32, %arg1: i32) -> (i32, i32) {
    %c0_i32 = arith.constant 0 : i32
    return %arg0, %arg1 : i32, i32
  }
}

</mosaic_0001>

<llo_original>
// kernel: tpu_custom_call.1
$region0: #{tpu_custom_call.1}
  #allocation0 [shape = 'u32[]', space=smem, size = 0x4, offset = 0x4, fixed_abs, tag = 'smem constant byte address 0x4 - core index']
  #allocation1 [shape = 'u32[144,128]{1,0:T(1,128)}', space=vmem, size = 0x12000, scoped, tag = 'internal scratch']
  %s0 = inlined_call_operand.hbm [shape: f32[2,1024], index: 0, kind: input, shape index: {}]
  %s1 = inlined_call_operand.hbm [shape: f32[2,1024], index: 1, kind: output, shape index: {}]
  %s2 = sld [smem:[#allocation0]]
  $region41: #{tpu_custom_call.1} parent=0
    _
  %s4 = ssub.s32 1, %s2
  %s5 = scalar_select 0, %s4, %s2
  $region1: #{tpu_custom_call.1} parent=0
    #allocation2 [shape = 'u8[32768]{0}', space=vmem, size = 0x8000, scoped, tag = 'input window, operand 0']
    #allocation3 [shape = 's32[2]{0}', space=sflag, size = 0x8, scoped, tag = 'scoped memory for tpu_custom_call.1']
    #allocation4 [shape = 's32[2]{0}', space=sflag, size = 0x8, scoped, tag = 'scoped memory for tpu_custom_call.1']
    #allocation5 [shape = 'u8[32768]{0}', space=vmem, size = 0x8000, scoped, tag = 'output window, operand 0']
    %6 = vsyncpa [#allocation3], 0
    %s7 = scalar_lea.sflag [#allocation3], 1
    %8 = vsyncpa %s7, 0
    %9 = vsyncpa [#allocation4], 0
    %s10 = scalar_lea.sflag [#allocation4], 1
    %11 = vsyncpa %s10, 0
    loop: start=0, step=1, limit=4
    $region2: #{tpu_custom_call.1} parent=1 // loop_pre_header
      _
    $region3: #{tpu_custom_call.1} parent=1 // loop_header
      %s13 = sphi 0, %s17
      %p14 = scmp.ge.s32.totalorder %s13, 4
      %s20 = sphi 0, %s32
      %s21 = sphi 0, %s28
      %s22 = sphi 0, %s20
      %s23 = sphi 0, %s21
      %s24 = sphi 0, %s22
      %s25 = sphi 0, %s23
      %s37 = sphi 0, %s39
      %s40 = sphi 0, %s37
      %s41 = sphi 0, %s40
      %s57 = sphi 0, %s41
      %s65 = sphi 0, %s67
      %s68 = sphi 0, %s65
      %s69 = sphi 0, %s68
      %s85 = sphi 0, %s69
    $region4: #{tpu_custom_call.1} parent=1 // loop_header_branch
      %16 = sbr.rel (%p14) target = $region8
    $region5: #{tpu_custom_call.1} parent=1 // loop_body
      %s18 = ssub.s32 %s13, 1
      %s19 = ssub.s32 %s13, 2
      %s26 = sadd.s32 1, %s21
      %p27 = scmp.ge.s32.totalorder %s26, 2
      %s28 = scalar_select %p27, 0, %s26
      %s29 = sadd.s32 1, %s20
      %s30 = scalar_select %p27, %s29, %s20
      %p31 = scmp.ge.s32.totalorder %s30, 1
      %s32 = scalar_select %p31, 0, %s30
      %s33 = ssub.s32 %s20, %s32
      %s34 = ssub.s32 %s21, %s28
      %s35 = sor.u32 %s33, %s34
      %p36 = scmp.eq.s32.totalorder %s35, 0
      %s38 = sadd.s32 %s37, 1
      %s39 = scalar_select %p36, %s37, %s38
      %p42 = pneg %p36
      %p43 = scmp.eq.s32.totalorder %s13, 1
      %p44 = por %p42, %p43
      %p45 = scmp.ne.s32.totalorder %s37, %s40
      %p46 = scmp.eq.s32.totalorder %s13, 0
      %p47 = por %p45, %p46
      %p48 = scmp.ne.s32.totalorder %s37, %s40
      %p49 = scmp.eq.s32.totalorder %s18, 1
      %p50 = por %p48, %p49
      %p51 = scmp.ne.s32.totalorder %s40, %s41
      %p52 = scmp.eq.s32.totalorder %s18, 0
      %p53 = por %p51, %p52
      %p54 = scmp.ne.s32.totalorder %s40, %s41
      %p55 = scmp.eq.s32.totalorder %s19, 1
      %p56 = por %p54, %p55
      %p58 = scmp.ne.s32.totalorder %s41, %s57
      %p59 = scmp.eq.s32.totalorder %s19, 0
      %p60 = por %p58, %p59
      %s61 = ssub.s32 %s20, %s32
      %s62 = ssub.s32 %s21, %s28
      %s63 = sor.u32 %s61, %s62
      %p64 = scmp.eq.s32.totalorder %s63, 0
      %s66 = sadd.s32 %s65, 1
      %s67 = scalar_select %p64, %s65, %s66
      %p70 = pneg %p64
      %p71 = scmp.eq.s32.totalorder %s13, 1
      %p72 = por %p70, %p71
      %p73 = scmp.ne.s32.totalorder %s65, %s68
      %p74 = scmp.eq.s32.totalorder %s13, 0
      %p75 = por %p73, %p74
      %p76 = scmp.ne.s32.totalorder %s65, %s68
      %p77 = scmp.eq.s32.totalorder %s18, 1
      %p78 = por %p76, %p77
      %p79 = scmp.ne.s32.totalorder %s68, %s69
      %p80 = scmp.eq.s32.totalorder %s18, 0
      %p81 = por %p79, %p80
      %p82 = scmp.ne.s32.totalorder %s68, %s69
      %p83 = scmp.eq.s32.totalorder %s19, 1
      %p84 = por %p82, %p83
      %p86 = scmp.ne.s32.totalorder %s69, %s85
      %p87 = scmp.eq.s32.totalorder %s19, 0
      %p88 = por %p86, %p87
      %p89 = scmp.le.s32.totalorder 1, %s13
      %p90 = scmp.lt.s32.totalorder %s13, 3
      %p91 = pnand %p89, %p90
      %p92 = pneg %p91
      // Predicated region
      $region9: #{tpu_custom_call.1} parent=5 // pred_check
        _
      $region10: #{tpu_custom_call.1} parent=5 // pred_check_branch
        %94 = sbr.rel (%p91) target = $region12
      $region11: #{tpu_custom_call.1} parent=5 // pred_region
        %s95 = ssub.s32 %s13, 1
      $region12: #{tpu_custom_call.1} parent=5 // pred_fallthru
        _
      %p96 = scmp.lt.s32.totalorder %s13, 2
      // Predicated region
      $region13: #{tpu_custom_call.1} parent=5 // pred_check
        %p97 = pneg %p96
      $region14: #{tpu_custom_call.1} parent=5 // pred_check_branch
        %99 = sbr.rel (%p97) target = $region16
      $region15: #{tpu_custom_call.1} parent=5 // pred_region
        // Predicated region
        $region17: #{tpu_custom_call.1} parent=15 // pred_check
          %p100 = pneg %p47
        $region18: #{tpu_custom_call.1} parent=15 // pred_check_branch
          %102 = sbr.rel (%p100) target = $region20
        $region19: #{tpu_custom_call.1} parent=15 // pred_region
          %s103 = sand.u32 %s37, 1
          %s104 = scalar_lea.sflag [#allocation3], %s103
          %s105 = sand.u32 %s37, 1
          %s106 = smul.addr %s105, 32
          %s107 = scalar_lea.vmem [#allocation2], %s106
          %s108 = smul.u32 4, %s20
          %s109 = smul.u32 4, %s21
          %s110 = ssub.s32 1, %s108
          %s111 = smul.u32 32, %s110
          %s112 = smul.u32 %s111, 4
          %s114 = ssub.s32 512, %s112
          %115 = vsyncadd %s104, %s114
          %p116 = scmp.ne.s32.totalorder 0, %s112
          %s117 = smul.addr %s108, 8
          %s118 = sadd.s32 %s109, %s117
          %s119 = smul.addr %s118, 32
          %s120 = scalar_lea.hbm %s0, %s119
          %s121 = smul.u32 8, %s110
          %s122 = sshll.u32 %s107, 4
          %s123 = int_to_ptr.vmem [resolvable:$true] %s122
          %s124 = sshll.u32 %s121, 4
          %128 = dma.hbm_to_vmem [thread:$0]  (%p116), %s120, %s124, %s123, %s104, 256, 128, 8
        $region20: #{tpu_custom_call.1} parent=15 // pred_fallthru
          _
      $region16: #{tpu_custom_call.1} parent=5 // pred_fallthru
        _
      %p129 = scmp.le.s32.totalorder 1, %s13
      %p130 = scmp.lt.s32.totalorder %s13, 3
      %p131 = pnand %p129, %p130
      %p132 = pneg %p131
      // Predicated region
      $region21: #{tpu_custom_call.1} parent=5 // pred_check
        _
      $region22: #{tpu_custom_call.1} parent=5 // pred_check_branch
        %134 = sbr.rel (%p131) target = $region24
      $region23: #{tpu_custom_call.1} parent=5 // pred_region
        %s135 = ssub.s32 %s13, 1
        %s136 = sand.u32 %s40, 1
        %s137 = scalar_lea.sflag [#allocation3], %s136
        %s138 = sand.u32 %s40, 1
        %s139 = smul.addr %s138, 32
        %s140 = scalar_lea.vmem [#allocation2], %s139
        // Predicated region
        $region25: #{tpu_custom_call.1} parent=23 // pred_check
          %p141 = pneg %p53
        $region26: #{tpu_custom_call.1} parent=23 // pred_check_branch
          %143 = sbr.rel (%p141) target = $region28
        $region27: #{tpu_custom_call.1} parent=23 // pred_region
          %144 = dma.done %s137, 512
        $region28: #{tpu_custom_call.1} parent=23 // pred_fallthru
          _
        %s145 = sand.u32 %s40, 1
        %s146 = scalar_lea.sflag [#allocation3], %s145
        %s147 = sand.u32 %s40, 1
        %s148 = smul.addr %s147, 32
        %s149 = scalar_lea.vmem [#allocation2], %s148
        %p150 = pneg %p53
        %p151 = pneg %p50
        %p152 = pneg %p81
        %p153 = pneg %p78
        %s154 = sand.u32 %s68, 1
        %s155 = scalar_lea.sflag [#allocation4], %s154
        %s156 = sand.u32 %s68, 1
        %s157 = smul.addr %s156, 32
        %s158 = scalar_lea.vmem [#allocation5], %s157
        %s159 = smul.u32 4, %s22
        %s160 = smul.u32 4, %s23
        %s161 = ssub.s32 1, %s159
        %s162 = smul.u32 32, %s161
        %s163 = smul.u32 %s162, 4
        %s164 = smul.u32 4, %s22
        %s165 = smul.u32 4, %s23
        %s166 = ssub.s32 1, %s164
        %s167 = smul.u32 32, %s166
        %s168 = smul.u32 %s167, 4
        %v169 = vld [vmem:[%s140] sm:$0xff]
        %v170 = vld [vmem:[%s140 + $0x8] sm:$0xff]
        %v171 = vld [vmem:[%s140 + $0x10] sm:$0xff]
        %v172 = vld [vmem:[%s140 + $0x18] sm:$0xff]
        %173 = vst [vmem:[%s158] sm:$0xff] %v169
        %174 = vst [vmem:[%s158 + $0x8] sm:$0xff] %v170
        %175 = vst [vmem:[%s158 + $0x10] sm:$0xff] %v171
        %176 = vst [vmem:[%s158 + $0x18] sm:$0xff] %v172
        %s177 = sand.u32 %s68, 1
        %s178 = scalar_lea.sflag [#allocation4], %s177
        %s179 = sand.u32 %s68, 1
        %s180 = smul.addr %s179, 32
        %s181 = scalar_lea.vmem [#allocation5], %s180
        // Predicated region
        $region29: #{tpu_custom_call.1} parent=23 // pred_check
          %p182 = pneg %p78
        $region30: #{tpu_custom_call.1} parent=23 // pred_check_branch
          %184 = sbr.rel (%p182) target = $region32
        $region31: #{tpu_custom_call.1} parent=23 // pred_region
          %s185 = smul.u32 4, %s22
          %s186 = smul.u32 4, %s23
          %s187 = ssub.s32 1, %s185
          %s188 = smul.u32 32, %s187
          %s189 = smul.u32 %s188, 4
          %s191 = ssub.s32 512, %s189
          %192 = vsyncadd %s178, %s191
          %p193 = scmp.ne.s32.totalorder 0, %s189
          %s194 = smul.addr %s185, 8
          %s195 = sadd.s32 %s186, %s194
          %s196 = smul.addr %s195, 32
          %s197 = scalar_lea.hbm %s1, %s196
          %s198 = smul.u32 8, %s187
          %s199 = sshll.u32 %s181, 4
          %s200 = int_to_ptr.vmem [resolvable:$true] %s199
          %s201 = sshll.u32 %s198, 4
          %205 = dma.vmem_to_hbm [thread:$0]  (%p193), %s200, %s201, %s197, %s178, 128, 256, 8
        $region32: #{tpu_custom_call.1} parent=23 // pred_fallthru
          _
      $region24: #{tpu_custom_call.1} parent=5 // pred_fallthru
        _
      %p206 = scmp.le.s32.totalorder 2, %s13
      // Predicated region
      $region33: #{tpu_custom_call.1} parent=5 // pred_check
        %p207 = pneg %p206
      $region34: #{tpu_custom_call.1} parent=5 // pred_check_branch
        %209 = sbr.rel (%p207) target = $region36
      $region35: #{tpu_custom_call.1} parent=5 // pred_region
        %s210 = ssub.s32 %s13, 2
        // Predicated region
        $region37: #{tpu_custom_call.1} parent=35 // pred_check
          %p211 = pneg %p84
        $region38: #{tpu_custom_call.1} parent=35 // pred_check_branch
          %213 = sbr.rel (%p211) target = $region40
        $region39: #{tpu_custom_call.1} parent=35 // pred_region
          %s214 = sand.u32 %s69, 1
          %s215 = scalar_lea.sflag [#allocation4], %s214
          %s216 = sand.u32 %s69, 1
          %s217 = smul.addr %s216, 32
          %s218 = scalar_lea.vmem [#allocation5], %s217
          %219 = dma.done %s215, 512
        $region40: #{tpu_custom_call.1} parent=35 // pred_fallthru
          _
      $region36: #{tpu_custom_call.1} parent=5 // pred_fallthru
        _
    $region6: #{tpu_custom_call.1} parent=1 // loop_footer
      %s17 = sadd.s32 1, %s13
    $region7: #{tpu_custom_call.1} parent=1 // loop_footer_branch
      %12 = sbr.rel target = $region3
    $region8: #{tpu_custom_call.1} parent=1 // loop_exit
      _
    %220 = vsyncpa [#allocation3], 1
    %s221 = scalar_lea.sflag [#allocation3], 1
    %222 = vsyncpa %s221, 1
    %223 = vsyncpa [#allocation4], 1
    %s224 = scalar_lea.sflag [#allocation4], 1
    %225 = vsyncpa %s224, 1

</llo_original>
